<compile_context>
chip_gen: v7x
topology: tpu7x:2x2x1
jax: 0.10.0
libtpu: 0.0.40
codegen_flags: <defaults>
</compile_context>

<pallas_src>
import functools
import math

import jax
import jax.numpy as jnp
from jax import lax
from jax.experimental import pallas as pl
from jax.experimental.pallas import tpu as pltpu


_VMEM_LIMIT = 32 * 1024 * 1024  # safe on v5e/v6e/v7x


def _choose_tile(n, requested, multiple):
    """Largest tile t <= requested with n % t == 0 and t % multiple == 0, else n."""
    if n <= requested:
        return n
    t = (min(requested, n) // multiple) * multiple
    while t >= multiple:
        if n % t == 0:
            return t
        t -= multiple
    return n


# ----------------------------------------------------------------------------
# Kernel A: fused projections.
#   qs = x @ [Wq*s | Ws] + [bq*s | bs]   (f32,  cols [q | skip])
#   kv = x @ [Wk   | Wv] + [bk   | bv]   (bf16, cols [k | v])
# ----------------------------------------------------------------------------
def _fused_proj_kernel(x_ref, wqs_ref, bqs_ref, wkv_ref, bkv_ref,
                       qs_ref, kv_ref):
    x_bf = x_ref[...].astype(jnp.bfloat16)
    qs_ref[...] = (
        jnp.dot(x_bf, wqs_ref[...], preferred_element_type=jnp.float32)
        + bqs_ref[...]
    )
    kv_ref[...] = (
        jnp.dot(x_bf, wkv_ref[...], preferred_element_type=jnp.float32)
        + bkv_ref[...]
    ).astype(jnp.bfloat16)


def _fused_projection(x, params, *, block_rows):
    n, fin = x.shape
    two_h = params["w_qs"].shape[1]
    tr = _choose_tile(n, block_rows, 16)
    return pl.pallas_call(
        _fused_proj_kernel,
        out_shape=(
            jax.ShapeDtypeStruct((n, two_h), jnp.float32),
            jax.ShapeDtypeStruct((n, two_h), jnp.bfloat16),
        ),
        grid=(n // tr,),
        in_specs=[
            pl.BlockSpec((tr, fin), lambda i: (i, 0)),
            pl.BlockSpec((fin, two_h), lambda i: (0, 0)),
            pl.BlockSpec((1, two_h), lambda i: (0, 0)),
            pl.BlockSpec((fin, two_h), lambda i: (0, 0)),
            pl.BlockSpec((1, two_h), lambda i: (0, 0)),
        ],
        out_specs=(
            pl.BlockSpec((tr, two_h), lambda i: (i, 0)),
            pl.BlockSpec((tr, two_h), lambda i: (i, 0)),
        ),
        compiler_params=pltpu.CompilerParams(
            dimension_semantics=("parallel",),
            vmem_limit_bytes=_VMEM_LIMIT,
        ),
    )(x, params["w_qs"], params["b_qs"], params["w_kv"], params["b_kv"])


# ----------------------------------------------------------------------------
# Kernel B: flash-style masked attention + skip (+ residual) + LayerNorm + ReLU
#   grid = (N/TQ, N/TK); online softmax over K blocks with m/l/acc scratch.
# ----------------------------------------------------------------------------
def _attn_ln_kernel(qs_ref, kv_ref, adj_ref, *rest,
                    add_residual, hidden, eps):
    if add_residual:
        res_ref, g_ref, b_ref, out_ref, m_sc, l_sc, acc_sc = rest
    else:
        res_ref = None
        g_ref, b_ref, out_ref, m_sc, l_sc, acc_sc = rest

    kv_step = pl.program_id(1)
    h = hidden

    @pl.when(kv_step == 0)
    def _():
        m_sc[...] = jnp.full_like(m_sc, -1e30)
        l_sc[...] = jnp.zeros_like(l_sc)
        acc_sc[...] = jnp.zeros_like(acc_sc)

    q = qs_ref[:, 0:h].astype(jnp.bfloat16)     # 1/sqrt(H) already folded in
    k = kv_ref[:, 0:h]                          # bf16
    v = kv_ref[:, h:2 * h]                      # bf16

    # (TQ,H) x (TK,H) contracting the feature axis -> (TQ,TK), f32 accumulate.
    scores = lax.dot_general(q, k, (((1,), (1,)), ((), ())),
                             preferred_element_type=jnp.float32)
    mask = adj_ref[...] > 0.0                   # bf16 adj -> bool
    # -3e38 fill: exp(masked - m_new) underflows to exactly 0 for non-edges,
    # since m_new >= -1e30 always (no second `where` needed, no NaNs).
    masked = jnp.where(mask, scores, -3.0e38)

    m_prev = m_sc[...]
    m_new = jnp.maximum(m_prev, jnp.max(masked, axis=1, keepdims=True))
    alpha = jnp.exp(m_prev - m_new)
    p = jnp.exp(masked - m_new)

    l_sc[...] = alpha * l_sc[...] + jnp.sum(p, axis=1, keepdims=True)
    acc_sc[...] = alpha * acc_sc[...] + jnp.dot(
        p.astype(jnp.bfloat16), v, preferred_element_type=jnp.float32)
    m_sc[...] = m_new

    @pl.when(kv_step == pl.num_programs(1) - 1)
    def _():
        denom = l_sc[...]
        denom = jnp.where(denom > 0.0, denom, 1.0)   # isolated node -> attn 0
        attn = acc_sc[...] * pl.reciprocal(denom, approx=True)

        y = attn + qs_ref[:, h:2 * h]                # + root/skip projection
        if add_residual:
            y = y + res_ref[...]

        # LayerNorm over features (PyTorch eps = 1e-5), then ReLU.
        mean = jnp.mean(y, axis=1, keepdims=True)
        var = jnp.mean((y - mean) * (y - mean), axis=1, keepdims=True)
        y = (y - mean) * lax.rsqrt(var + eps) * g_ref[...] + b_ref[...]
        out_ref[...] = jnp.maximum(y, 0.0)


def transformer_conv_block(x, res, adj, params, *, add_residual,
                           block_q=256, block_k=512):
    """One fused (TransformerConv [+residual] -> LayerNorm -> ReLU) block."""
    n = x.shape[0]
    hidden = params["ln_g"].shape[1]
    two_h = 2 * hidden

    qs, kv = _fused_projection(x, params, block_rows=block_q)

    tq = _choose_tile(n, block_q, 16)
    tk = _choose_tile(n, block_k, 128)
    grid = (n // tq, n // tk)

    kernel = functools.partial(_attn_ln_kernel, add_residual=add_residual,
                               hidden=hidden, eps=1e-5)

    in_specs = [
        pl.BlockSpec((tq, two_h), lambda i, k: (i, 0)),   # q | skip rows (f32)
        pl.BlockSpec((tk, two_h), lambda i, k: (k, 0)),   # k | v rows (bf16)
        pl.BlockSpec((tq, tk), lambda i, k: (i, k)),      # adj tile (bf16)
    ]
    args = [qs, kv, adj]
    if add_residual:
        in_specs.append(pl.BlockSpec((tq, hidden), lambda i, k: (i, 0)))
        args.append(res)
    in_specs += [pl.BlockSpec((1, hidden), lambda i, k: (0, 0))] * 2
    args += [params["ln_g"], params["ln_b"]]

    return pl.pallas_call(
        kernel,
        out_shape=jax.ShapeDtypeStruct((n, hidden), jnp.float32),
        grid=grid,
        in_specs=in_specs,
        out_specs=pl.BlockSpec((tq, hidden), lambda i, k: (i, 0)),
        scratch_shapes=[
            pltpu.VMEM((tq, 1), jnp.float32),             # running max m
            pltpu.VMEM((tq, 1), jnp.float32),             # running sum l
            pltpu.VMEM((tq, hidden), jnp.float32),        # output accumulator
        ],
        compiler_params=pltpu.CompilerParams(
            dimension_semantics=("parallel", "arbitrary"),
            vmem_limit_bytes=_VMEM_LIMIT,
        ),
    )(*args)


# ----------------------------------------------------------------------------
# Parameter init (deterministic, synthetic).  Weights are pre-fused & bf16;
# the 1/sqrt(H) attention scale is folded into Wq / bq.
# ----------------------------------------------------------------------------
def _init_conv_params(key, in_dim, hidden_dim):
    ks = jax.random.split(key, 8)
    s = 0.1
    scale = 1.0 / math.sqrt(hidden_dim)
    wq = s * jax.random.normal(ks[0], (in_dim, hidden_dim), jnp.float32)
    bq = s * jax.random.normal(ks[1], (1, hidden_dim), jnp.float32)
    wk = s * jax.random.normal(ks[2], (in_dim, hidden_dim), jnp.float32)
    bk = s * jax.random.normal(ks[3], (1, hidden_dim), jnp.float32)
    wv = s * jax.random.normal(ks[4], (in_dim, hidden_dim), jnp.float32)
    bv = s * jax.random.normal(ks[5], (1, hidden_dim), jnp.float32)
    ws = s * jax.random.normal(ks[6], (in_dim, hidden_dim), jnp.float32)
    bs = s * jax.random.normal(ks[7], (1, hidden_dim), jnp.float32)
    return {
        # cols [q*scale | skip]  /  [k | v]
        "w_qs": jnp.concatenate([wq * scale, ws], axis=1).astype(jnp.bfloat16),
        "b_qs": jnp.concatenate([bq * scale, bs], axis=1),            # f32
        "w_kv": jnp.concatenate([wk, wv], axis=1).astype(jnp.bfloat16),
        "b_kv": jnp.concatenate([bk, bv], axis=1),                     # f32
        "ln_g": jnp.ones((1, hidden_dim), jnp.float32),
        "ln_b": jnp.zeros((1, hidden_dim), jnp.float32),
    }


def init_unimp_frond_params(key, input_dim, hidden_dim, num_layers):
    keys = jax.random.split(key, num_layers + 1)
    return {
        "input_proj": _init_conv_params(keys[0], input_dim, hidden_dim),
        "layers": [
            _init_conv_params(keys[i + 1], hidden_dim, hidden_dim)
            for i in range(num_layers)
        ],
    }


# ----------------------------------------------------------------------------
# Forward pass (eval mode: F.dropout with training=False is identity)
# ----------------------------------------------------------------------------
def unimp_frond_forward(params, x, adj, *, block_q=256, block_k=512):
    # x = relu(input_norm(input_proj(x, edge_index)))   [no residual]
    h = transformer_conv_block(x, None, adj, params["input_proj"],
                               add_residual=False,
                               block_q=block_q, block_k=block_k)
    # for each layer: x = relu(norm(layer(x, edge_index) + x))
    for layer_params in params["layers"]:
        h = transformer_conv_block(h, h, adj, layer_params,
                                   add_residual=True,
                                   block_q=block_q, block_k=block_k)
    return h


# ----------------------------------------------------------------------------
# Demo / smoke test
# ----------------------------------------------------------------------------
if __name__ == "__main__":
    N = 256           # nodes (enough to exercise a (4, 2) attention grid)
    INPUT_DIM = 8
    HIDDEN_DIM = 32
    NUM_LAYERS = 2
    E = 1024          # directed edges

    root = jax.random.PRNGKey(0)
    k_feat, k_src, k_dst, k_params = jax.random.split(root, 4)

    x = jax.random.normal(k_feat, (N, INPUT_DIM), jnp.float32)

    # deterministic edge_index (2, E): ring graph + random extra edges
    ring_src = jnp.arange(N, dtype=jnp.int32)
    ring_dst = (ring_src + 1) % N
    rnd_src = jax.random.randint(k_src, (E - N,), 0, N, dtype=jnp.int32)
    rnd_dst = jax.random.randint(k_dst, (E - N,), 0, N, dtype=jnp.int32)
    edge_index = jnp.stack(
        [jnp.concatenate([ring_src, rnd_src]),
         jnp.concatenate([ring_dst, rnd_dst])], axis=0)

    # dense adjacency mask in bf16: adj[dst, src] = 1 (message flows src -> dst)
    adj = (jnp.zeros((N, N), jnp.float32)
           .at[edge_index[1], edge_index[0]].set(1.0)
           .astype(jnp.bfloat16))

    params = init_unimp_frond_params(k_params, INPUT_DIM, HIDDEN_DIM, NUM_LAYERS)

    out = unimp_frond_forward(params, x, adj, block_q=64, block_k=128)
    out = jax.block_until_ready(out)

    assert out.shape == (N, HIDDEN_DIM)
    assert bool(jnp.all(jnp.isfinite(out)))
    print("KERNEL_OK")
</pallas_src>

<mosaic_0001>
module attributes {stable_mosaic.version = 11 : i64} {
  func.func @_fused_proj_kernel(%arg0: i32, %arg1: memref<64x8xf32, #tpu.memory_space<vmem>>, %arg2: memref<8x64xbf16, #tpu.memory_space<vmem>>, %arg3: memref<1x64xf32, #tpu.memory_space<vmem>>, %arg4: memref<8x64xbf16, #tpu.memory_space<vmem>>, %arg5: memref<1x64xf32, #tpu.memory_space<vmem>>, %arg6: memref<64x64xf32, #tpu.memory_space<vmem>>, %arg7: memref<64x64xbf16, #tpu.memory_space<vmem>>) attributes {dimension_semantics = [#tpu.dimension_semantics<parallel>], iteration_bounds = array<i64: 4>, scalar_prefetch = 0 : i64, scratch_operands = 0 : i64, tpu.core_type = #tpu.core_type<tc>, window_params = [{transform_indices = @transform_0, window_bounds = array<i64: 64, 8>}, {pipeline_mode = #tpu.pipeline_mode<synchronous>, transform_indices = @transform_1, window_bounds = array<i64: 8, 64>}, {pipeline_mode = #tpu.pipeline_mode<synchronous>, transform_indices = @transform_2, window_bounds = array<i64: 1, 64>}, {pipeline_mode = #tpu.pipeline_mode<synchronous>, transform_indices = @transform_3, window_bounds = array<i64: 8, 64>}, {pipeline_mode = #tpu.pipeline_mode<synchronous>, transform_indices = @transform_4, window_bounds = array<i64: 1, 64>}, {transform_indices = @transform_5, window_bounds = array<i64: 64, 64>}, {transform_indices = @transform_6, window_bounds = array<i64: 64, 64>}]} {
    %c0 = arith.constant 0 : index
    %c0_0 = arith.constant 0 : index
    %0 = vector.load %arg1[%c0, %c0_0] : memref<64x8xf32, #tpu.memory_space<vmem>>, vector<64x8xf32>
    %1 = arith.truncf %0 : vector<64x8xf32> to vector<64x8xbf16>
    %c0_1 = arith.constant 0 : index
    %c0_2 = arith.constant 0 : index
    %2 = vector.load %arg2[%c0_1, %c0_2] : memref<8x64xbf16, #tpu.memory_space<vmem>>, vector<8x64xbf16>
    %cst = arith.constant dense<0.000000e+00> : vector<64x64xf32>
    %3 = tpu.matmul %1, %2, %cst {dimension_numbers = #tpu.dot_dimension_numbers<[1], [0], [0], [1], [0, 0, 1, 1], [], []>} : vector<64x8xbf16>, vector<8x64xbf16>, vector<64x64xf32> -> vector<64x64xf32>
    %c0_3 = arith.constant 0 : index
    %c0_4 = arith.constant 0 : index
    %4 = vector.load %arg3[%c0_3, %c0_4] : memref<1x64xf32, #tpu.memory_space<vmem>>, vector<1x64xf32>
    %5 = vector.broadcast %4 : vector<1x64xf32> to vector<64x64xf32>
    %6 = arith.addf %3, %5 : vector<64x64xf32>
    %c0_5 = arith.constant 0 : index
    %c0_6 = arith.constant 0 : index
    %7 = vector.load %arg6[%c0_5, %c0_6] : memref<64x64xf32, #tpu.memory_space<vmem>>, vector<64x64xf32>
    tpu.vector_store %arg6[%c0_5, %c0_6], %6 {strides = array<i32>} : memref<64x64xf32, #tpu.memory_space<vmem>>, vector<64x64xf32>,
    %c0_7 = arith.constant 0 : index
    %c0_8 = arith.constant 0 : index
    %8 = vector.load %arg4[%c0_7, %c0_8] : memref<8x64xbf16, #tpu.memory_space<vmem>>, vector<8x64xbf16>
    %cst_9 = arith.constant dense<0.000000e+00> : vector<64x64xf32>
    %9 = tpu.matmul %1, %8, %cst_9 {dimension_numbers = #tpu.dot_dimension_numbers<[1], [0], [0], [1], [0, 0, 1, 1], [], []>} : vector<64x8xbf16>, vector<8x64xbf16>, vector<64x64xf32> -> vector<64x64xf32>
    %c0_10 = arith.constant 0 : index
    %c0_11 = arith.constant 0 : index
    %10 = vector.load %arg5[%c0_10, %c0_11] : memref<1x64xf32, #tpu.memory_space<vmem>>, vector<1x64xf32>
    %11 = vector.broadcast %10 : vector<1x64xf32> to vector<64x64xf32>
    %12 = arith.addf %9, %11 : vector<64x64xf32>
    %13 = arith.truncf %12 : vector<64x64xf32> to vector<64x64xbf16>
    %c0_12 = arith.constant 0 : index
    %c0_13 = arith.constant 0 : index
    %14 = vector.load %arg7[%c0_12, %c0_13] : memref<64x64xbf16, #tpu.memory_space<vmem>>, vector<64x64xbf16>
    tpu.vector_store %arg7[%c0_12, %c0_13], %13 {strides = array<i32>} : memref<64x64xbf16, #tpu.memory_space<vmem>>, vector<64x64xbf16>,
    return
  }
  func.func @transform_0(%arg0: i32) -> (i32, i32) {
    %c0_i32 = arith.constant 0 : i32
    %c0_i32_0 = arith.constant 0 : i32
    return %arg0, %c0_i32 : i32, i32
  }
  func.func @transform_1(%arg0: i32) -> (i32, i32) {
    %c0_i32 = arith.constant 0 : i32
    %c0_i32_0 = arith.constant 0 : i32
    %c0_i32_1 = arith.constant 0 : i32
    return %c0_i32, %c0_i32_0 : i32, i32
  }
  func.func @transform_2(%arg0: i32) -> (i32, i32) {
    %c0_i32 = arith.constant 0 : i32
    %c0_i32_0 = arith.constant 0 : i32
    %c0_i32_1 = arith.constant 0 : i32
    return %c0_i32, %c0_i32_0 : i32, i32
  }
  func.func @transform_3(%arg0: i32) -> (i32, i32) {
    %c0_i32 = arith.constant 0 : i32
    %c0_i32_0 = arith.constant 0 : i32
    %c0_i32_1 = arith.constant 0 : i32
    return %c0_i32, %c0_i32_0 : i32, i32
  }
  func.func @transform_4(%arg0: i32) -> (i32, i32) {
    %c0_i32 = arith.constant 0 : i32
    %c0_i32_0 = arith.constant 0 : i32
    %c0_i32_1 = arith.constant 0 : i32
    return %c0_i32, %c0_i32_0 : i32, i32
  }
  func.func @transform_5(%arg0: i32) -> (i32, i32) {
    %c0_i32 = arith.constant 0 : i32
    %c0_i32_0 = arith.constant 0 : i32
    return %arg0, %c0_i32 : i32, i32
  }
  func.func @transform_6(%arg0: i32) -> (i32, i32) {
    %c0_i32 = arith.constant 0 : i32
    %c0_i32_0 = arith.constant 0 : i32
    return %arg0, %c0_i32 : i32, i32
  }
}

</mosaic_0001>

<llo_original>
// kernel: tpu_custom_call.1
$region0: #{tpu_custom_call.1}
  #allocation0 [shape = 'u32[]', space=smem, size = 0x4, offset = 0x4, fixed_abs, tag = 'smem constant byte address 0x4 - core index']
  #allocation1 [shape = 'u32[144,128]{1,0:T(1,128)}', space=vmem, size = 0x12000, scoped, tag = 'internal scratch']
  %s0 = inlined_call_operand.vmem [shape: f32[256,8], index: 0, kind: input, shape index: {}]
  %s1 = inlined_call_operand.vmem [shape: bf16[8,64], index: 1, kind: input, shape index: {}]
  %s2 = inlined_call_operand.vmem [shape: f32[1,64], index: 2, kind: input, shape index: {}]
  %s3 = inlined_call_operand.vmem [shape: bf16[8,64], index: 3, kind: input, shape index: {}]
  %s4 = inlined_call_operand.vmem [shape: f32[1,64], index: 4, kind: input, shape index: {}]
  %s5 = inlined_call_operand.vmem [shape: f32[256,64], index: 5, kind: output, shape index: {0}]
  %s6 = inlined_call_operand.vmem [shape: bf16[256,64], index: 6, kind: output, shape index: {1}]
  %7 = xla_tuple %s5, %s6
  %s8 = sld [smem:[#allocation0]]
  $region61: #{tpu_custom_call.1} parent=0
    _
  %s10 = ssub.s32 1, %s8
  %s11 = scalar_select 0, %s10, %s8
  loop: start=0, step=1, limit=6
  $region2: #{tpu_custom_call.1} parent=0 // loop_pre_header
    _
  $region3: #{tpu_custom_call.1} parent=0 // loop_header
    %s13 = sphi 0, %s17
    %p14 = scmp.ge.s32.totalorder %s13, 6
    %s23 = sphi 0, %s25
    %s26 = sphi 0, %s23
    %s27 = sphi 0, %s26
    %s43 = sphi 0, %s27
    %s47 = sphi 0, %s47
    %s49 = sphi 0, %s47
    %s50 = sphi 0, %s49
    %s64 = sphi 0, %s50
    %s68 = sphi 0, %s68
    %s70 = sphi 0, %s68
    %s71 = sphi 0, %s70
    %s85 = sphi 0, %s71
    %s89 = sphi 0, %s89
    %s91 = sphi 0, %s89
    %s92 = sphi 0, %s91
    %s106 = sphi 0, %s92
    %s110 = sphi 0, %s110
    %s112 = sphi 0, %s110
    %s113 = sphi 0, %s112
    %s127 = sphi 0, %s113
    %s133 = sphi 0, %s135
    %s136 = sphi 0, %s133
    %s137 = sphi 0, %s136
    %s153 = sphi 0, %s137
    %s159 = sphi 0, %s161
    %s162 = sphi 0, %s159
    %s163 = sphi 0, %s162
    %s179 = sphi 0, %s163
  $region4: #{tpu_custom_call.1} parent=0 // loop_header_branch
    %16 = sbr.rel (%p14) target = $region8
  $region5: #{tpu_custom_call.1} parent=0 // loop_body
    %s18 = ssub.s32 %s13, 1
    %s19 = ssub.s32 %s13, 2
    %s20 = sadd.s32 %s13, 1
    %s21 = ssub.s32 %s13, %s20
    %p22 = scmp.eq.s32.totalorder %s21, 0
    %s24 = sadd.s32 %s23, 1
    %s25 = scalar_select %p22, %s23, %s24
    %p28 = pneg %p22
    %p29 = scmp.eq.s32.totalorder %s13, 3
    %p30 = por %p28, %p29
    %p31 = scmp.ne.s32.totalorder %s23, %s26
    %p32 = scmp.eq.s32.totalorder %s13, 0
    %p33 = por %p31, %p32
    %p34 = scmp.ne.s32.totalorder %s23, %s26
    %p35 = scmp.eq.s32.totalorder %s18, 3
    %p36 = por %p34, %p35
    %p37 = scmp.ne.s32.totalorder %s26, %s27
    %p38 = scmp.eq.s32.totalorder %s18, 0
    %p39 = por %p37, %p38
    %p40 = scmp.ne.s32.totalorder %s26, %s27
    %p41 = scmp.eq.s32.totalorder %s19, 3
    %p42 = por %p40, %p41
    %p44 = scmp.ne.s32.totalorder %s27, %s43
    %p45 = scmp.eq.s32.totalorder %s19, 0
    %p46 = por %p44, %p45
    %s48 = sadd.s32 %s47, 1
    %p51 = scmp.eq.s32.totalorder %s13, 3
    %p52 = scmp.ne.s32.totalorder %s47, %s49
    %p53 = scmp.eq.s32.totalorder %s13, 0
    %p54 = por %p52, %p53
    %p55 = scmp.ne.s32.totalorder %s47, %s49
    %p56 = scmp.eq.s32.totalorder %s18, 3
    %p57 = por %p55, %p56
    %p58 = scmp.ne.s32.totalorder %s49, %s50
    %p59 = scmp.eq.s32.totalorder %s18, 0
    %p60 = por %p58, %p59
    %p61 = scmp.ne.s32.totalorder %s49, %s50
    %p62 = scmp.eq.s32.totalorder %s19, 3
    %p63 = por %p61, %p62
    %p65 = scmp.ne.s32.totalorder %s50, %s64
    %p66 = scmp.eq.s32.totalorder %s19, 0
    %p67 = por %p65, %p66
    %s69 = sadd.s32 %s68, 1
    %p72 = scmp.eq.s32.totalorder %s13, 3
    %p73 = scmp.ne.s32.totalorder %s68, %s70
    %p74 = scmp.eq.s32.totalorder %s13, 0
    %p75 = por %p73, %p74
    %p76 = scmp.ne.s32.totalorder %s68, %s70
    %p77 = scmp.eq.s32.totalorder %s18, 3
    %p78 = por %p76, %p77
    %p79 = scmp.ne.s32.totalorder %s70, %s71
    %p80 = scmp.eq.s32.totalorder %s18, 0
    %p81 = por %p79, %p80
    %p82 = scmp.ne.s32.totalorder %s70, %s71
    %p83 = scmp.eq.s32.totalorder %s19, 3
    %p84 = por %p82, %p83
    %p86 = scmp.ne.s32.totalorder %s71, %s85
    %p87 = scmp.eq.s32.totalorder %s19, 0
    %p88 = por %p86, %p87
    %s90 = sadd.s32 %s89, 1
    %p93 = scmp.eq.s32.totalorder %s13, 3
    %p94 = scmp.ne.s32.totalorder %s89, %s91
    %p95 = scmp.eq.s32.totalorder %s13, 0
    %p96 = por %p94, %p95
    %p97 = scmp.ne.s32.totalorder %s89, %s91
    %p98 = scmp.eq.s32.totalorder %s18, 3
    %p99 = por %p97, %p98
    %p100 = scmp.ne.s32.totalorder %s91, %s92
    %p101 = scmp.eq.s32.totalorder %s18, 0
    %p102 = por %p100, %p101
    %p103 = scmp.ne.s32.totalorder %s91, %s92
    %p104 = scmp.eq.s32.totalorder %s19, 3
    %p105 = por %p103, %p104
    %p107 = scmp.ne.s32.totalorder %s92, %s106
    %p108 = scmp.eq.s32.totalorder %s19, 0
    %p109 = por %p107, %p108
    %s111 = sadd.s32 %s110, 1
    %p114 = scmp.eq.s32.totalorder %s13, 3
    %p115 = scmp.ne.s32.totalorder %s110, %s112
    %p116 = scmp.eq.s32.totalorder %s13, 0
    %p117 = por %p115, %p116
    %p118 = scmp.ne.s32.totalorder %s110, %s112
    %p119 = scmp.eq.s32.totalorder %s18, 3
    %p120 = por %p118, %p119
    %p121 = scmp.ne.s32.totalorder %s112, %s113
    %p122 = scmp.eq.s32.totalorder %s18, 0
    %p123 = por %p121, %p122
    %p124 = scmp.ne.s32.totalorder %s112, %s113
    %p125 = scmp.eq.s32.totalorder %s19, 3
    %p126 = por %p124, %p125
    %p128 = scmp.ne.s32.totalorder %s113, %s127
    %p129 = scmp.eq.s32.totalorder %s19, 0
    %p130 = por %p128, %p129
    %s131 = ssub.s32 %s13, %s20
    %p132 = scmp.eq.s32.totalorder %s131, 0
    %s134 = sadd.s32 %s133, 1
    %s135 = scalar_select %p132, %s133, %s134
    %p138 = pneg %p132
    %p139 = scmp.eq.s32.totalorder %s13, 3
    %p140 = por %p138, %p139
    %p141 = scmp.ne.s32.totalorder %s133, %s136
    %p142 = scmp.eq.s32.totalorder %s13, 0
    %p143 = por %p141, %p142
    %p144 = scmp.ne.s32.totalorder %s133, %s136
    %p145 = scmp.eq.s32.totalorder %s18, 3
    %p146 = por %p144, %p145
    %p147 = scmp.ne.s32.totalorder %s136, %s137
    %p148 = scmp.eq.s32.totalorder %s18, 0
    %p149 = por %p147, %p148
    %p150 = scmp.ne.s32.totalorder %s136, %s137
    %p151 = scmp.eq.s32.totalorder %s19, 3
    %p152 = por %p150, %p151
    %p154 = scmp.ne.s32.totalorder %s137, %s153
    %p155 = scmp.eq.s32.totalorder %s19, 0
    %p156 = por %p154, %p155
    %s157 = ssub.s32 %s13, %s20
    %p158 = scmp.eq.s32.totalorder %s157, 0
    %s160 = sadd.s32 %s159, 1
    %s161 = scalar_select %p158, %s159, %s160
    %p164 = pneg %p158
    %p165 = scmp.eq.s32.totalorder %s13, 3
    %p166 = por %p164, %p165
    %p167 = scmp.ne.s32.totalorder %s159, %s162
    %p168 = scmp.eq.s32.totalorder %s13, 0
    %p169 = por %p167, %p168
    %p170 = scmp.ne.s32.totalorder %s159, %s162
    %p171 = scmp.eq.s32.totalorder %s18, 3
    %p172 = por %p170, %p171
    %p173 = scmp.ne.s32.totalorder %s162, %s163
    %p174 = scmp.eq.s32.totalorder %s18, 0
    %p175 = por %p173, %p174
    %p176 = scmp.ne.s32.totalorder %s162, %s163
    %p177 = scmp.eq.s32.totalorder %s19, 3
    %p178 = por %p176, %p177
    %p180 = scmp.ne.s32.totalorder %s163, %s179
    %p181 = scmp.eq.s32.totalorder %s19, 0
    %p182 = por %p180, %p181
    %p183 = scmp.le.s32.totalorder 1, %s13
    %p184 = scmp.lt.s32.totalorder %s13, 5
    %p185 = pnand %p183, %p184
    %p186 = pneg %p185
    // Predicated region
    $region9: #{tpu_custom_call.1} parent=5 // pred_check
      _
    $region10: #{tpu_custom_call.1} parent=5 // pred_check_branch
      %188 = sbr.rel (%p185) target = $region12
    $region11: #{tpu_custom_call.1} parent=5 // pred_region
      %s189 = ssub.s32 %s13, 1
      // Predicated region
      $region13: #{tpu_custom_call.1} parent=11 // pred_check
        %p190 = pneg %p60
      $region14: #{tpu_custom_call.1} parent=11 // pred_check_branch
        %192 = sbr.rel (%p190) target = $region16
      $region15: #{tpu_custom_call.1} parent=11 // pred_region
        _
      $region16: #{tpu_custom_call.1} parent=11 // pred_fallthru
        _
      // Predicated region
      $region17: #{tpu_custom_call.1} parent=11 // pred_check
        %p193 = pneg %p81
      $region18: #{tpu_custom_call.1} parent=11 // pred_check_branch
        %195 = sbr.rel (%p193) target = $region20
      $region19: #{tpu_custom_call.1} parent=11 // pred_region
        _
      $region20: #{tpu_custom_call.1} parent=11 // pred_fallthru
        _
      // Predicated region
      $region21: #{tpu_custom_call.1} parent=11 // pred_check
        %p196 = pneg %p102
      $region22: #{tpu_custom_call.1} parent=11 // pred_check_branch
        %198 = sbr.rel (%p196) target = $region24
      $region23: #{tpu_custom_call.1} parent=11 // pred_region
        _
      $region24: #{tpu_custom_call.1} parent=11 // pred_fallthru
        _
      // Predicated region
      $region25: #{tpu_custom_call.1} parent=11 // pred_check
        %p199 = pneg %p123
      $region26: #{tpu_custom_call.1} parent=11 // pred_check_branch
        %201 = sbr.rel (%p199) target = $region28
      $region27: #{tpu_custom_call.1} parent=11 // pred_region
        _
      $region28: #{tpu_custom_call.1} parent=11 // pred_fallthru
        _
    $region12: #{tpu_custom_call.1} parent=5 // pred_fallthru
      _
    %p202 = scmp.lt.s32.totalorder %s13, 4
    // Predicated region
    $region29: #{tpu_custom_call.1} parent=5 // pred_check
      %p203 = pneg %p202
    $region30: #{tpu_custom_call.1} parent=5 // pred_check_branch
      %205 = sbr.rel (%p203) target = $region32
    $region31: #{tpu_custom_call.1} parent=5 // pred_region
      // Predicated region
      $region33: #{tpu_custom_call.1} parent=31 // pred_check
        %p206 = pneg %p33
      $region34: #{tpu_custom_call.1} parent=31 // pred_check_branch
        %208 = sbr.rel (%p206) target = $region36
      $region35: #{tpu_custom_call.1} parent=31 // pred_region
        %s209 = smul.u32 8, %s13
        %p210 = scmp.lt.s32.totalorder %s209, 31
        %s211 = scalar_select %p210, %s209, 31
        %s212 = smul.addr %s211, 8
        %s213 = scalar_lea.vmem %s0, %s212
        %s214 = smul.u32 8, %s13
      $region36: #{tpu_custom_call.1} parent=31 // pred_fallthru
        _
    $region32: #{tpu_custom_call.1} parent=5 // pred_fallthru
      _
    %p215 = scmp.le.s32.totalorder 1, %s13
    %p216 = scmp.lt.s32.totalorder %s13, 5
    %p217 = pnand %p215, %p216
    %p218 = pneg %p217
    // Predicated region
    $region37: #{tpu_custom_call.1} parent=5 // pred_check
      _
    $region38: #{tpu_custom_call.1} parent=5 // pred_check_branch
      %220 = sbr.rel (%p217) target = $region40
    $region39: #{tpu_custom_call.1} parent=5 // pred_region
      %s221 = ssub.s32 %s13, 1
      %s222 = smul.u32 8, %s18
      %p223 = scmp.lt.s32.totalorder %s222, 31
      %s224 = scalar_select %p223, %s222, 31
      %s225 = smul.addr %s224, 8
      %s226 = scalar_lea.vmem %s0, %s225
      %p227 = pneg %p39
      %p228 = pneg %p36
      %p229 = pneg %p60
      %p230 = pneg %p57
      %p231 = pneg %p81
      %p232 = pneg %p78
      %p233 = pneg %p102
      %p234 = pneg %p99
      %p235 = pneg %p123
      %p236 = pneg %p120
      %p237 = pneg %p149
      %p238 = pneg %p146
      %s239 = smul.u32 8, %s18
      %p240 = scmp.lt.s32.totalorder %s239, 31
      %s241 = scalar_select %p240, %s239, 31
      %s242 = smul.addr %s241, 8
      %s243 = scalar_lea.vmem %s5, %s242
      %p244 = pneg %p175
      %p245 = pneg %p172
      %s246 = smul.u32 8, %s18
      %p247 = scmp.lt.s32.totalorder %s246, 31
      %s248 = scalar_select %p247, %s246, 31
      %s249 = smul.addr %s248, 4
      %s250 = scalar_lea.vmem %s6, %s249
      %s251 = smul.u32 8, %s18
      %p252 = scmp.lt.s32.totalorder %s251, 31
      %s253 = scalar_select %p252, %s251, 31
      %s254 = smul.addr %s253, 8
      %s255 = scalar_lea.vmem %s0, %s254
      %s256 = smul.u32 8, %s18
      %s257 = smul.u32 8, %s18
      %p258 = scmp.lt.s32.totalorder %s257, 31
      %s259 = scalar_select %p258, %s257, 31
      %s260 = smul.addr %s259, 8
      %s261 = scalar_lea.vmem %s5, %s260
      %s262 = smul.u32 8, %s18
      %s263 = smul.u32 8, %s18
      %p264 = scmp.lt.s32.totalorder %s263, 31
      %s265 = scalar_select %p264, %s263, 31
      %s266 = smul.addr %s265, 4
      %s267 = scalar_lea.vmem %s6, %s266
      %s268 = smul.u32 8, %s18
      %v270 = vld [vmem:[%s255] sm:$0xff]
      %v271 = vld [vmem:[%s255 + $0x8] sm:$0xff]
      %v272 = vld [vmem:[%s255 + $0x10] sm:$0xff]
      %v273 = vld [vmem:[%s255 + $0x18] sm:$0xff]
      %v274 = vld [vmem:[%s255 + $0x20] sm:$0xff]
      %v275 = vld [vmem:[%s255 + $0x28] sm:$0xff]
      %v276 = vld [vmem:[%s255 + $0x30] sm:$0xff]
      %v277 = vld [vmem:[%s255 + $0x38] sm:$0xff]
      %v278 = vpack.c.bf16 %v271, %v270
      %v279 = vpack.c.bf16 %v273, %v272
      %v280 = vpack.c.bf16 %v275, %v274
      %v281 = vpack.c.bf16 %v277, %v276
      %v282 = vld [vmem:[%s1] sm:$0xf]
      %v283 = vld [vmem:[%s2] sm:$0x1]
      %v285 = vlaneseq
      %v286 = vshrl.u32 %v285, 7
      %v287 = vsub.s32 0, %v286
      %v288 = vrot.slane %v283, %v287
      %vm290 = vcmask 64512
      %v292 = vsel %vm290, %v278, 0
      %v295 = vsel %vm290, %v279, 0
      %v298 = vsel %vm290, %v280, 0
      %v301 = vsel %vm290, %v281, 0
      %vm303 = vcmask 1043456
      %v305 = vsel %vm303, %v282, 0
      %307 = vmatprep.subr.bf16.mxu0 0
      %308 = vmatpush1.bf16.msra.mxu0 %v305
      %309 = vmatprep.subr.bf16.mxu0 0
      %310 = vmatpush1.bf16.msra.mxu0 0
      %311 = vmatprep.subr.bf16.mxu0 0
      %312 = vmatpush1.bf16.msra.mxu0 0
      %313 = vmatprep.subr.bf16.mxu0 0
      %314 = vmatpush1.bf16.msra.mxu0 0
      %315 = vmatprep.subr.bf16.mxu0 0
      %316 = vmatpush1.bf16.msra.mxu0 0
      %317 = vmatprep.subr.bf16.mxu0 0
      %318 = vmatpush1.bf16.msra.mxu0 0
      %319 = vmatprep.subr.bf16.mxu0 0
      %320 = vmatpush1.bf16.msra.mxu0 0
      %321 = vmatprep.subr.bf16.mxu0 0
      %322 = vmatpush1.bf16.msra.mxu0 0
      %323 = vmatprep.subr.bf16.mxu0 0
      %324 = vmatpush1.bf16.msra.mxu0 0
      %325 = vmatprep.subr.bf16.mxu0 0
      %326 = vmatpush1.bf16.msra.mxu0 0
      %327 = vmatprep.subr.bf16.mxu0 0
      %328 = vmatpush1.bf16.msra.mxu0 0
      %329 = vmatprep.subr.bf16.mxu0 0
      %330 = vmatpush1.bf16.msra.mxu0 0
      %331 = vmatprep.subr.bf16.mxu0 0
      %332 = vmatpush1.bf16.msra.mxu0 0
      %333 = vmatprep.subr.bf16.mxu0 0
      %334 = vmatpush1.bf16.msra.mxu0 0
      %335 = vmatprep.subr.bf16.mxu0 0
      %336 = vmatpush1.bf16.msra.mxu0 0
      %337 = vmatprep.subr.bf16.mxu0 0
      %338 = vmatpush1.bf16.msra.mxu0 0
      %339 = vmatprep.mubr.bf16.mxu0 0
      %340 = vmatmul.mubr.bf16.gmra.mrb[0].mxu0 %v292
      %v341 = vpop.f32.mrb[0].mxu0
      %v342 = vadd.f32 %v288, %v341
      %v343 = vpop.f32.mrb[0].mxu0
      %v344 = vpop.f32.mrb[0].mxu0
      %v345 = vadd.f32 %v288, %v344
      %v346 = vpop.f32.mrb[0].mxu0
      %347 = vmatprep.mubr.bf16.mxu0 0
      %348 = vmatmul.mubr.bf16.gmra.mrb[0].mxu0 %v295
      %v349 = vpop.f32.mrb[0].mxu0
      %v350 = vadd.f32 %v288, %v349
      %v351 = vpop.f32.mrb[0].mxu0
      %v352 = vpop.f32.mrb[0].mxu0
      %v353 = vadd.f32 %v288, %v352
      %v354 = vpop.f32.mrb[0].mxu0
      %355 = vmatprep.mubr.bf16.mxu0 0
      %356 = vmatmul.mubr.bf16.gmra.mrb[0].mxu0 %v298
      %v357 = vpop.f32.mrb[0].mxu0
      %v358 = vadd.f32 %v288, %v357
      %v359 = vpop.f32.mrb[0].mxu0
      %v360 = vpop.f32.mrb[0].mxu0
      %v361 = vadd.f32 %v288, %v360
      %v362 = vpop.f32.mrb[0].mxu0
      %363 = vmatprep.mubr.bf16.mxu0 0
      %364 = vmatmul.mubr.bf16.gmra.mrb[0].mxu0 %v301
      %v365 = vpop.f32.mrb[0].mxu0
      %v366 = vadd.f32 %v288, %v365
      %v367 = vpop.f32.mrb[0].mxu0
      %v368 = vpop.f32.mrb[0].mxu0
      %v369 = vadd.f32 %v288, %v368
      %v370 = vpop.f32.mrb[0].mxu0
      %371 = vdwg.mxu0
      %vm372 = vcmask 523264
      %373 = vst.msk [vmem:[%s261] sm:$0xff] %vm372, %v342
      %374 = vst.msk [vmem:[%s261 + $0x8] sm:$0xff] %vm372, %v345
      %375 = vst.msk [vmem:[%s261 + $0x10] sm:$0xff] %vm372, %v350
      %376 = vst.msk [vmem:[%s261 + $0x18] sm:$0xff] %vm372, %v353
      %377 = vst.msk [vmem:[%s261 + $0x20] sm:$0xff] %vm372, %v358
      %378 = vst.msk [vmem:[%s261 + $0x28] sm:$0xff] %vm372, %v361
      %379 = vst.msk [vmem:[%s261 + $0x30] sm:$0xff] %vm372, %v366
      %380 = vst.msk [vmem:[%s261 + $0x38] sm:$0xff] %vm372, %v369
      %v381 = vld [vmem:[%s3] sm:$0xf]
      %v382 = vld [vmem:[%s4] sm:$0x1]
      %v384 = vlaneseq
      %v385 = vshrl.u32 %v384, 7
      %v386 = vsub.s32 0, %v385
      %v387 = vrot.slane %v382, %v386
      %v390 = vsel %vm303, %v381, 0
      %392 = vmatprep.subr.bf16.mxu0 0
      %393 = vmatpush1.bf16.msra.mxu0 %v390
      %394 = vmatprep.subr.bf16.mxu0 0
      %395 = vmatpush1.bf16.msra.mxu0 0
      %396 = vmatprep.subr.bf16.mxu0 0
      %397 = vmatpush1.bf16.msra.mxu0 0
      %398 = vmatprep.subr.bf16.mxu0 0
      %399 = vmatpush1.bf16.msra.mxu0 0
      %400 = vmatprep.subr.bf16.mxu0 0
      %401 = vmatpush1.bf16.msra.mxu0 0
      %402 = vmatprep.subr.bf16.mxu0 0
      %403 = vmatpush1.bf16.msra.mxu0 0
      %404 = vmatprep.subr.bf16.mxu0 0
      %405 = vmatpush1.bf16.msra.mxu0 0
      %406 = vmatprep.subr.bf16.mxu0 0
      %407 = vmatpush1.bf16.msra.mxu0 0
      %408 = vmatprep.subr.bf16.mxu0 0
      %409 = vmatpush1.bf16.msra.mxu0 0
      %410 = vmatprep.subr.bf16.mxu0 0
      %411 = vmatpush1.bf16.msra.mxu0 0
      %412 = vmatprep.subr.bf16.mxu0 0
      %413 = vmatpush1.bf16.msra.mxu0 0
      %414 = vmatprep.subr.bf16.mxu0 0
      %415 = vmatpush1.bf16.msra.mxu0 0
      %416 = vmatprep.subr.bf16.mxu0 0
      %417 = vmatpush1.bf16.msra.mxu0 0
      %418 = vmatprep.subr.bf16.mxu0 0
      %419 = vmatpush1.bf16.msra.mxu0 0
      %420 = vmatprep.subr.bf16.mxu0 0
      %421 = vmatpush1.bf16.msra.mxu0 0
      %422 = vmatprep.subr.bf16.mxu0 0
      %423 = vmatpush1.bf16.msra.mxu0 0
      %424 = vmatprep.mubr.bf16.mxu0 0
      %425 = vmatmul.mubr.bf16.gmra.mrb[0].mxu0 %v292
      %v426 = vpop.f32.mrb[0].mxu0
      %v427 = vadd.f32 %v387, %v426
      %v428 = vpop.f32.mrb[0].mxu0
      %v429 = vpop.f32.mrb[0].mxu0
      %v430 = vadd.f32 %v387, %v429
      %v431 = vpop.f32.mrb[0].mxu0
      %432 = vmatprep.mubr.bf16.mxu0 0
      %433 = vmatmul.mubr.bf16.gmra.mrb[0].mxu0 %v295
      %v434 = vpop.f32.mrb[0].mxu0
      %v435 = vadd.f32 %v387, %v434
      %v436 = vpop.f32.mrb[0].mxu0
      %v437 = vpop.f32.mrb[0].mxu0
      %v438 = vadd.f32 %v387, %v437
      %v439 = vpop.f32.mrb[0].mxu0
      %440 = vmatprep.mubr.bf16.mxu0 0
      %441 = vmatmul.mubr.bf16.gmra.mrb[0].mxu0 %v298
      %v442 = vpop.f32.mrb[0].mxu0
      %v443 = vadd.f32 %v387, %v442
      %v444 = vpop.f32.mrb[0].mxu0
      %v445 = vpop.f32.mrb[0].mxu0
      %v446 = vadd.f32 %v387, %v445
      %v447 = vpop.f32.mrb[0].mxu0
      %448 = vmatprep.mubr.bf16.mxu0 0
      %449 = vmatmul.mubr.bf16.gmra.mrb[0].mxu0 %v301
      %v450 = vpop.f32.mrb[0].mxu0
      %v451 = vadd.f32 %v387, %v450
      %v452 = vpop.f32.mrb[0].mxu0
      %v453 = vpop.f32.mrb[0].mxu0
      %v454 = vadd.f32 %v387, %v453
      %v455 = vpop.f32.mrb[0].mxu0
      %456 = vdwg.mxu0
      %v457 = vpack.c.bf16 %v430, %v427
      %v458 = vpack.c.bf16 %v438, %v435
      %v459 = vpack.c.bf16 %v446, %v443
      %v460 = vpack.c.bf16 %v454, %v451
      %v465 = vunpack.c.l.b16 %v457
      %v466 = vunpack.c.h.b16 %v457
      %v467 = vunpack.c.l.b16 %v458
      %v468 = vunpack.c.h.b16 %v458
      %v469 = vunpack.c.l.b16 %v459
      %v470 = vunpack.c.h.b16 %v459
      %v471 = vunpack.c.l.b16 %v460
      %v472 = vunpack.c.h.b16 %v460
      %v473 = vpack.c.b16 %v465, %v465
      %v474 = vpack.c.b16 %v466, %v466
      %v475 = vpack.c.b16 %v467, %v467
      %v476 = vpack.c.b16 %v468, %v468
      %v477 = vpack.c.b16 %v469, %v469
      %v478 = vpack.c.b16 %v470, %v470
      %v479 = vpack.c.b16 %v471, %v471
      %v480 = vpack.c.b16 %v472, %v472
      %vm489 = vcmask 519168
      %490 = vst.msk [vmem:[%s267] sm:$0xf] %vm489, %v473
      %491 = vst.msk [vmem:[%s267 + $0x4] sm:$0xf] %vm489, %v474
      %492 = vst.msk [vmem:[%s267 + $0x8] sm:$0xf] %vm489, %v475
      %493 = vst.msk [vmem:[%s267 + $0xc] sm:$0xf] %vm489, %v476
      %494 = vst.msk [vmem:[%s267 + $0x10] sm:$0xf] %vm489, %v477
      %495 = vst.msk [vmem:[%s267 + $0x14] sm:$0xf] %vm489, %v478
      %496 = vst.msk [vmem:[%s267 + $0x18] sm:$0xf] %vm489, %v479
      %497 = vst.msk [vmem:[%s267 + $0x1c] sm:$0xf] %vm489, %v480
      %s498 = smul.u32 8, %s18
      %p499 = scmp.lt.s32.totalorder %s498, 31
      %s500 = scalar_select %p499, %s498, 31
      %s501 = smul.addr %s500, 8
      %s502 = scalar_lea.vmem %s5, %s501
      %s503 = smul.u32 8, %s18
      %p504 = scmp.lt.s32.totalorder %s503, 31
      %s505 = scalar_select %p504, %s503, 31
      %s506 = smul.addr %s505, 4
      %s507 = scalar_lea.vmem %s6, %s506
      // Predicated region
      $region41: #{tpu_custom_call.1} parent=39 // pred_check
        %p508 = pneg %p146
      $region42: #{tpu_custom_call.1} parent=39 // pred_check_branch
        %510 = sbr.rel (%p508) target = $region44
      $region43: #{tpu_custom_call.1} parent=39 // pred_region
        %s511 = smul.u32 8, %s18
      $region44: #{tpu_custom_call.1} parent=39 // pred_fallthru
        _
      // Predicated region
      $region45: #{tpu_custom_call.1} parent=39 // pred_check
        %p512 = pneg %p172
      $region46: #{tpu_custom_call.1} parent=39 // pred_check_branch
        %514 = sbr.rel (%p512) target = $region48
      $region47: #{tpu_custom_call.1} parent=39 // pred_region
        %s515 = smul.u32 8, %s18
      $region48: #{tpu_custom_call.1} parent=39 // pred_fallthru
        _
    $region40: #{tpu_custom_call.1} parent=5 // pred_fallthru
      _
    %p516 = scmp.le.s32.totalorder 2, %s13
    // Predicated region
    $region49: #{tpu_custom_call.1} parent=5 // pred_check
      %p517 = pneg %p516
    $region50: #{tpu_custom_call.1} parent=5 // pred_check_branch
      %519 = sbr.rel (%p517) target = $region52
    $region51: #{tpu_custom_call.1} parent=5 // pred_region
      %s520 = ssub.s32 %s13, 2
      // Predicated region
      $region53: #{tpu_custom_call.1} parent=51 // pred_check
        %p521 = pneg %p152
      $region54: #{tpu_custom_call.1} parent=51 // pred_check_branch
        %523 = sbr.rel (%p521) target = $region56
      $region55: #{tpu_custom_call.1} parent=51 // pred_region
        %s524 = smul.u32 8, %s19
        %p525 = scmp.lt.s32.totalorder %s524, 31
        %s526 = scalar_select %p525, %s524, 31
        %s527 = smul.addr %s526, 8
        %s528 = scalar_lea.vmem %s5, %s527
      $region56: #{tpu_custom_call.1} parent=51 // pred_fallthru
        _
      // Predicated region
      $region57: #{tpu_custom_call.1} parent=51 // pred_check
        %p529 = pneg %p178
      $region58: #{tpu_custom_call.1} parent=51 // pred_check_branch
        %531 = sbr.rel (%p529) target = $region60
      $region59: #{tpu_custom_call.1} parent=51 // pred_region
        %s532 = smul.u32 8, %s19
        %p533 = scmp.lt.s32.totalorder %s532, 31
        %s534 = scalar_select %p533, %s532, 31
        %s535 = smul.addr %s534, 4
        %s536 = scalar_lea.vmem %s6, %s535
      $region60: #{tpu_custom_call.1} parent=51 // pred_fallthru
        _
    $region52: #{tpu_custom_call.1} parent=5 // pred_fallthru
      _
  $region6: #{tpu_custom_call.1} parent=0 // loop_footer
    %s17 = sadd.s32 1, %s13
  $region7: #{tpu_custom_call.1} parent=0 // loop_footer_branch
    %12 = sbr.rel target = $region3
  $region8: #{tpu_custom_call.1} parent=0 // loop_exit
    _

</llo_original>
